<compile_context>
chip_gen: v7x
topology: tpu7x:2x2x1
jax: 0.10.0
libtpu: 0.0.40
codegen_flags: <defaults>
</compile_context>

<pallas_src>
import numpy as np
import jax
import jax.numpy as jnp
from jax.experimental import pallas as pl
from jax.experimental.pallas import tpu as pltpu

_C_PAD = 8          # channels padded to one full 8-sublane group
_ROW_G2 = 128       # statmat row offsets (must match pack_downstep_params)
_ROW_GAMMA = 192
_ROW_BETA = 200
_ROW_MASK = 208
_STAT_ROWS = 216


# --------------------------------- kernel ------------------------------------

def _make_downstep_kernel(hp, wp, lanes, roll_sign):
    """Fused DownStep kernel for pooled spatial size (hp, wp); lanes = B*hp*wp."""

    def kernel(x4_ref, cin_ref, cw_ref, convw_ref, stat_ref, out_ref):
        f32 = jnp.float32
        bf16 = jnp.bfloat16

        # ---- constants loaded from the packed slab (nothing rebuilt with iota) ----
        m_mean = stat_ref[0:128, :]                                # (L, L) per-image mean
        m_w0 = stat_ref[_ROW_MASK + 0:_ROW_MASK + 1, :] != 0.0     # w == 0
        m_wl = stat_ref[_ROW_MASK + 1:_ROW_MASK + 2, :] != 0.0     # w == wp-1
        m_h0 = stat_ref[_ROW_MASK + 2:_ROW_MASK + 3, :] != 0.0     # h == 0
        m_hl = stat_ref[_ROW_MASK + 3:_ROW_MASK + 4, :] != 0.0     # h == hp-1

        # ---- lane rotations (XLU) with circular-boundary correction ----
        def roll_l(v, s):
            # Shifts are written for the jnp.roll convention (result[l] = v[l - s]);
            # roll_sign (from the runtime probe) flips them if the HW is the opposite.
            return pltpu.roll(v, (roll_sign * s) % lanes, 1)

        def sh_w_plus(v):    # value at (h, (w + 1) % W)
            return jnp.where(m_wl, roll_l(v, wp - 1), roll_l(v, -1))

        def sh_w_minus(v):   # value at (h, (w - 1) % W)
            return jnp.where(m_w0, roll_l(v, -(wp - 1)), roll_l(v, 1))

        def sh_h_plus(v):    # value at ((h + 1) % H, w)
            return jnp.where(m_hl, roll_l(v, (hp - 1) * wp), roll_l(v, -wp))

        def sh_h_minus(v):   # value at ((h - 1) % H, w)
            return jnp.where(m_h0, roll_l(v, -(hp - 1) * wp), roll_l(v, wp))

        def circ_conv3x3(x, wmat):
            """x: (8, L) f32; wmat: (8, 72) bf16 (column order kw, kh, ci)."""
            hstk = jnp.concatenate([sh_h_minus(x), x, sh_h_plus(x)], axis=0)    # (24, L)
            patches = jnp.concatenate(
                [sh_w_minus(hstk), hstk, sh_w_plus(hstk)], axis=0)              # (72, L)
            return jnp.dot(wmat, patches.astype(bf16), preferred_element_type=f32)

        def gelu(v):  # exact erf GELU (torch nn.GELU default)
            return 0.5 * v * (1.0 + jax.lax.erf(v * 0.7071067811865476))

        def ada_gn(x, gi, t_s, t_b, z_s, z_b, eps=1e-5):
            """GroupNorm (affine folded into t_s/t_b) + AdaGN, single-pass stats."""
            stats = jnp.concatenate([x, x * x], axis=0)                         # (16, L)
            sm = jnp.dot(stats, m_mean, preferred_element_type=f32)             # spatial E[.]
            g2 = stat_ref[_ROW_G2 + 16 * gi:_ROW_G2 + 16 * gi + 16, 0:16]       # blockdiag(g, g)
            gm = jnp.dot(g2, sm, preferred_element_type=f32)                    # group E[.]
            mean = gm[0:_C_PAD]
            var = gm[_C_PAD:2 * _C_PAD] - mean * mean
            xn = (x - mean) * jax.lax.rsqrt(var + eps)
            return z_s * (t_s * xn + t_b) + z_b

        # ---- MaxPool2d(kernel_size=2): elementwise max over the 4 window taps ----
        x = jnp.maximum(jnp.maximum(x4_ref[0], x4_ref[1]),
                        jnp.maximum(x4_ref[2], x4_ref[3]))                      # (8, L)

        # ---- all 16 conditioning Linears (+ folded GN affine + biases) = 1 matmul ----
        cond = jnp.dot(cw_ref[...], cin_ref[...], preferred_element_type=f32)   # (128, L)

        def slot(i):  # rows 0:64 = t-path slots, 64:128 = z-path slots (8 rows each)
            r = 8 * i
            return cond[r:r + _C_PAD], cond[64 + r:64 + r + _C_PAD]

        def unet_conv(x, blk):
            ts1, zs1 = slot(4 * blk + 0)
            tb1, zb1 = slot(4 * blk + 1)
            ts2, zs2 = slot(4 * blk + 2)
            tb2, zb2 = slot(4 * blk + 3)
            h = circ_conv3x3(x, convw_ref[2 * blk])
            h = ada_gn(h, 2 * blk + 0, ts1, tb1, zs1, zb1)
            h = gelu(h)
            h = circ_conv3x3(h, convw_ref[2 * blk + 1])
            h = ada_gn(h, 2 * blk + 1, ts2, tb2, zs2, zb2)
            return h + gelu(h)

        h = unet_conv(x, 0)
        h = unet_conv(h, 1)

        # ---- GDN: y_i = x_i * rsqrt(beta_i + sum_j gamma[i, j] x_j^2) ----
        gamma = stat_ref[_ROW_GAMMA:_ROW_GAMMA + _C_PAD, 0:_C_PAD].astype(bf16)
        beta = stat_ref[_ROW_BETA:_ROW_BETA + _C_PAD, 0:1]
        norm = jnp.dot(gamma, (h * h).astype(bf16), preferred_element_type=f32) + beta
        out_ref[...] = h * jax.lax.rsqrt(norm)                     # (8, L) unmasked store

    return kernel


# ----------------------------- parameter packing ------------------------------

def compute_groups(channels: int) -> int:
    num_groups = 1
    while channels % 2 == 0:
        channels //= 2
        num_groups *= 2
    return min(num_groups, 8)


def _group_matrix(c):
    """(c, c) channel-group averaging matrix (the spatial 1/P lives in M_mean)."""
    g = compute_groups(c)
    cg = c // g
    gid = np.arange(c) // cg
    return (gid[:, None] == gid[None, :]).astype(np.float32) / float(cg)


def _init_unet_conv(key, cin, cout, time_dim, latent_dim):
    """Synthetic torch-layout parameters for one UNetConv block."""
    cint = cout  # UNetConv: int_channels defaults to out_channels
    ks = jax.random.split(key, 22)

    def rnd(k, shape, scale=0.2):
        return scale * jax.random.normal(k, shape, dtype=jnp.float32)

    return dict(
        conv1=rnd(ks[0], (cint, cin, 3, 3)),
        conv2=rnd(ks[1], (cout, cint, 3, 3)),
        gn1_w=1.0 + rnd(ks[2], (cint,), 0.05), gn1_b=rnd(ks[3], (cint,), 0.05),
        gn2_w=1.0 + rnd(ks[4], (cout,), 0.05), gn2_b=rnd(ks[5], (cout,), 0.05),
        ts1=(rnd(ks[6], (cint, time_dim)), rnd(ks[7], (cint,), 0.05)),
        tb1=(rnd(ks[8], (cint, time_dim)), rnd(ks[9], (cint,), 0.05)),
        ts2=(rnd(ks[10], (cout, time_dim)), rnd(ks[11], (cout,), 0.05)),
        tb2=(rnd(ks[12], (cout, time_dim)), rnd(ks[13], (cout,), 0.05)),
        zs1=(rnd(ks[14], (cint, latent_dim)), rnd(ks[15], (cint,), 0.05)),
        zb1=(rnd(ks[16], (cint, latent_dim)), rnd(ks[17], (cint,), 0.05)),
        zs2=(rnd(ks[18], (cout, latent_dim)), rnd(ks[19], (cout,), 0.05)),
        zb2=(rnd(ks[20], (cout, latent_dim)), rnd(ks[21], (cout,), 0.05)),
        cin=cin, cint=cint, cout=cout,
    )


def make_downstep_params(key, c_in, c_out, time_dim, latent_dim, batch, height, width):
    """Synthesize raw DownStep params and pack them into 3 kernel-ready slabs."""
    c_int_ds = c_in  # DownStep default: int_channels = in_channels
    k1, k2 = jax.random.split(key)
    b1 = _init_unet_conv(k1, c_in, c_int_ds, time_dim, latent_dim)
    b2 = _init_unet_conv(k2, c_int_ds, c_out, time_dim, latent_dim)
    dims = (c_in, b1['cint'], b1['cout'], b2['cint'], b2['cout'])
    assert max(dims) <= _C_PAD, "packing assumes channel counts <= 8 at this toy size"

    hp, wp = height // 2, width // 2
    p_img = hp * wp
    lanes = batch * p_img
    assert lanes == 128, "kernel assumes B*Hp*Wp == 128 (see TODO for larger sizes)"

    # GDN effective (post-reparameterization) parameters: strictly positive.
    gdn_beta = np.ones((c_out,), np.float32)
    gdn_gamma = (0.1 * np.eye(c_out) + 0.01).astype(np.float32)

    # ---- conv weights: torch (Cout, Cin, 3, 3), zero-padded to 8 channels, packed as
    #      (8, 72) with column minor-order (kw, kh, ci) to match the in-kernel
    #      [w-minus | center | w-plus] x [h-minus | center | h-plus] stack; bf16. ----
    convw = np.zeros((4, _C_PAD, 9 * _C_PAD), np.float32)
    for i, w in enumerate([b1['conv1'], b1['conv2'], b2['conv1'], b2['conv2']]):
        w = np.asarray(w)
        wpad = np.zeros((_C_PAD, _C_PAD, 3, 3), np.float32)
        wpad[:w.shape[0], :w.shape[1]] = w
        convw[i] = wpad.transpose(0, 3, 2, 1).reshape(_C_PAD, 9 * _C_PAD)

    # ---- conditioning: 16 Linears + folded GN affine + biases as one block-diag slab.
    #      Output rows 0:64 t-path, 64:128 z-path (8 rows/slot, order blk0[s1,b1,s2,b2],
    #      blk1[...]); input rows [0:T]=t, [T:T+Z]=z, [T+Z]=1 (bias column). ----
    n_in = time_dim + latent_dim + 1
    cond_cols = ((n_in + 7) // 8) * 8
    bias_col = time_dim + latent_dim
    cond_w = np.zeros((128, cond_cols), np.float32)

    def fill_block(blk, base_slot):
        g1w, g1b = np.asarray(blk['gn1_w']), np.asarray(blk['gn1_b'])
        g2w, g2b = np.asarray(blk['gn2_w']), np.asarray(blk['gn2_b'])
        ws1, bs1 = np.asarray(blk['ts1'][0]), np.asarray(blk['ts1'][1])
        wb1, bb1 = np.asarray(blk['tb1'][0]), np.asarray(blk['tb1'][1])
        ws2, bs2 = np.asarray(blk['ts2'][0]), np.asarray(blk['ts2'][1])
        wb2, bb2 = np.asarray(blk['tb2'][0]), np.asarray(blk['tb2'][1])
        # GroupNorm affine folded into the t path:
        #   t_s*(gn_w*xn + gn_b) + t_b == (t_s*gn_w)*xn + (t_s*gn_b + t_b)
        t_entries = [
            (ws1 * g1w[:, None],       bs1 * g1w),
            (ws1 * g1b[:, None] + wb1, bs1 * g1b + bb1),
            (ws2 * g2w[:, None],       bs2 * g2w),
            (ws2 * g2b[:, None] + wb2, bs2 * g2b + bb2),
        ]
        z_entries = [blk['zs1'], blk['zb1'], blk['zs2'], blk['zb2']]
        for j, (w, b) in enumerate(t_entries):
            r = 8 * (base_slot + j)
            cond_w[r:r + w.shape[0], 0:time_dim] = w
            cond_w[r:r + b.shape[0], bias_col] = b
        for j, (w, b) in enumerate(z_entries):
            w, b = np.asarray(w), np.asarray(b)
            r = 64 + 8 * (base_slot + j)
            cond_w[r:r + w.shape[0], time_dim:time_dim + latent_dim] = w
            cond_w[r:r + b.shape[0], bias_col] = b

    fill_block(b1, 0)
    fill_block(b2, 4)

    # ---- f32 stats/constants slab: M_mean, group matrices, GDN, wrap masks ----
    stat = np.zeros((_STAT_ROWS, 128), np.float32)
    lane = np.arange(lanes)
    same_img = (lane[:, None] // p_img) == (lane[None, :] // p_img)
    stat[0:lanes, 0:lanes] = same_img.astype(np.float32) / float(p_img)   # M_mean
    for i, c in enumerate([b1['cint'], b1['cout'], b2['cint'], b2['cout']]):
        g = _group_matrix(c)
        r = _ROW_G2 + 16 * i
        stat[r:r + c, 0:c] = g                 # block-diag [g 0; 0 g] for the [x; x^2] stack
        stat[r + 8:r + 8 + c, 8:8 + c] = g
    stat[_ROW_GAMMA:_ROW_GAMMA + c_out, 0:c_out] = gdn_gamma
    stat[_ROW_BETA:_ROW_BETA + _C_PAD, 0] = 1.0     # padded beta rows stay finite
    stat[_ROW_BETA:_ROW_BETA + c_out, 0] = gdn_beta
    w_idx = lane % wp
    h_idx = (lane // wp) % hp
    stat[_ROW_MASK + 0, 0:lanes] = (w_idx == 0)
    stat[_ROW_MASK + 1, 0:lanes] = (w_idx == wp - 1)
    stat[_ROW_MASK + 2, 0:lanes] = (h_idx == 0)
    stat[_ROW_MASK + 3, 0:lanes] = (h_idx == hp - 1)

    raw = dict(block1=b1, block2=b2,
               gdn_beta=jnp.asarray(gdn_beta), gdn_gamma=jnp.asarray(gdn_gamma))
    packed = dict(convw=jnp.asarray(convw, dtype=jnp.bfloat16),
                  cond_w=jnp.asarray(cond_w),
                  statmat=jnp.asarray(stat),
                  dims=dims, time_dim=time_dim, latent_dim=latent_dim)
    return raw, packed


# ------------------------------ host-side wrapper ------------------------------

def detect_roll_sign():
    """Pin down pltpu.roll's lane-shift direction with a tiny probe kernel."""
    def probe(x_ref, o_ref):
        o_ref[...] = pltpu.roll(x_ref[...], 1, 1)

    x = jnp.tile(jnp.arange(128, dtype=jnp.float32)[None, :], (8, 1))
    out = pl.pallas_call(
        probe,
        out_shape=jax.ShapeDtypeStruct((8, 128), jnp.float32),
        in_specs=[pl.BlockSpec(memory_space=pltpu.MemorySpace.VMEM)],
        out_specs=pl.BlockSpec(memory_space=pltpu.MemorySpace.VMEM),
    )(x)
    out = np.asarray(jax.block_until_ready(out))
    if np.array_equal(out, np.asarray(jnp.roll(x, 1, axis=1))):
        return 1       # result[l] = v[l - shift]  (jnp.roll convention)
    if np.array_equal(out, np.asarray(jnp.roll(x, -1, axis=1))):
        return -1      # result[l] = v[l + shift]
    raise RuntimeError("unrecognized pltpu.roll semantics")


def downstep_forward(x_nchw, t, z, packed, roll_sign):
    """DownStep.forward.  x_nchw: (B, Cin, H, W); t: (B, time_dim); z: (B, latent_dim)."""
    c_in, _, _, _, c2_out = packed['dims']
    time_dim, latent_dim = packed['time_dim'], packed['latent_dim']
    B, C, H, W = x_nchw.shape
    hp, wp = H // 2, W // 2
    p_img = hp * wp
    lanes = B * p_img
    assert C == c_in and lanes == 128

    # Host-side layout plumbing (pure reshape/transpose/pad, no compute): expose the
    # four 2x2 pool taps on a leading axis, flatten (b, h, w) onto the 128-lane axis,
    # pad channels to a full 8-sublane group.
    x6 = x_nchw.astype(jnp.float32).reshape(B, C, hp, 2, wp, 2)
    x4 = jnp.transpose(x6, (3, 5, 1, 0, 2, 4)).reshape(4, C, lanes)
    x4 = jnp.pad(x4, ((0, 0), (0, _C_PAD - C), (0, 0)))

    # Conditioning inputs broadcast to lanes on the host; bias row of ones appended.
    cond_cols = packed['cond_w'].shape[1]
    cond_in = jnp.zeros((cond_cols, lanes), jnp.float32)
    cond_in = cond_in.at[0:time_dim].set(
        jnp.repeat(t.astype(jnp.float32).T, p_img, axis=1))
    cond_in = cond_in.at[time_dim:time_dim + latent_dim].set(
        jnp.repeat(z.astype(jnp.float32).T, p_img, axis=1))
    cond_in = cond_in.at[time_dim + latent_dim].set(1.0)

    kernel = _make_downstep_kernel(hp, wp, lanes, roll_sign)
    inputs = [x4, cond_in, packed['cond_w'], packed['convw'], packed['statmat']]
    out = pl.pallas_call(
        kernel,
        out_shape=jax.ShapeDtypeStruct((_C_PAD, lanes), jnp.float32),
        in_specs=[pl.BlockSpec(memory_space=pltpu.MemorySpace.VMEM)] * len(inputs),
        out_specs=pl.BlockSpec(memory_space=pltpu.MemorySpace.VMEM),
    )(*inputs)
    out = out[:c2_out].reshape(c2_out, B, hp, wp)      # (Cout, B, hp, wp) -> NCHW
    return jnp.transpose(out, (1, 0, 2, 3))


# -------------------- pure-JAX reference of the torch forward ------------------

def _ref_gelu(v):
    return 0.5 * v * (1.0 + jax.lax.erf(v * 0.7071067811865476))


def _ref_circ_conv(x, w):
    """3x3 conv, circular padding, bf16 MXU operands (mirrors the kernel's cast)."""
    xp = jnp.pad(x, ((0, 0), (0, 0), (1, 1), (1, 1)), mode='wrap')
    return jax.lax.conv_general_dilated(
        xp.astype(jnp.bfloat16), w.astype(jnp.bfloat16),
        window_strides=(1, 1), padding='VALID',
        dimension_numbers=('NCHW', 'OIHW', 'NCHW'),
        preferred_element_type=jnp.float32)


def _ref_group_norm(x, gamma, beta, eps=1e-5):
    B, C, H, W = x.shape
    g = compute_groups(C)
    xg = x.reshape(B, g, C // g, H, W)
    mean = xg.mean(axis=(2, 3, 4), keepdims=True)
    var = jnp.mean((xg - mean) ** 2, axis=(2, 3, 4), keepdims=True)
    xn = ((xg - mean) * jax.lax.rsqrt(var + eps)).reshape(B, C, H, W)
    return xn * gamma[None, :, None, None] + beta[None, :, None, None]


def _ref_unet_conv(x, t, z, p):
    def lin(wb, v):
        w, b = wb
        return v @ w.T + b

    ts1, tb1 = lin(p['ts1'], t), lin(p['tb1'], t)
    ts2, tb2 = lin(p['ts2'], t), lin(p['tb2'], t)
    zs1, zb1 = lin(p['zs1'], z), lin(p['zb1'], z)
    zs2, zb2 = lin(p['zs2'], z), lin(p['zb2'], z)

    def ada(h, gw, gb, ts, tb, zs, zb):
        h = _ref_group_norm(h, gw, gb)
        h = ts[:, :, None, None] * h + tb[:, :, None, None]
        return zs[:, :, None, None] * h + zb[:, :, None, None]

    h = _ref_circ_conv(x, p['conv1'])
    h = ada(h, p['gn1_w'], p['gn1_b'], ts1, tb1, zs1, zb1)
    h = _ref_gelu(h)
    h = _ref_circ_conv(h, p['conv2'])
    h = ada(h, p['gn2_w'], p['gn2_b'], ts2, tb2, zs2, zb2)
    return h + _ref_gelu(h)


def downstep_reference(x, t, z, raw):
    """torch DownStep.forward: MaxPool2d(2) -> UNetConv -> UNetConv -> GDN."""
    B, C, H, W = x.shape
    xp = x.reshape(B, C, H // 2, 2, W // 2, 2).max(axis=(3, 5))
    h = _ref_unet_conv(xp, t, z, raw['block1'])
    h = _ref_unet_conv(h, t, z, raw['block2'])
    norm = jnp.einsum('ij,bjhw->bihw',
                      raw['gdn_gamma'].astype(jnp.bfloat16),
                      (h * h).astype(jnp.bfloat16),
                      preferred_element_type=jnp.float32)
    norm = norm + raw['gdn_beta'][None, :, None, None]
    return h * jax.lax.rsqrt(norm)


if __name__ == "__main__":
    B, IN_CH, OUT_CH, H, W = 2, 4, 8, 16, 16
    TIME_DIM, LATENT_DIM = 32, 14 * 9

    key = jax.random.PRNGKey(0)
    kx, kt, kz, kp = jax.random.split(key, 4)
    x = jax.random.normal(kx, (B, IN_CH, H, W), dtype=jnp.float32)
    t = jax.random.normal(kt, (B, TIME_DIM), dtype=jnp.float32)
    z = jax.random.normal(kz, (B, LATENT_DIM), dtype=jnp.float32)

    raw, packed = make_downstep_params(kp, IN_CH, OUT_CH, TIME_DIM, LATENT_DIM, B, H, W)
    roll_sign = detect_roll_sign()

    out = jax.block_until_ready(downstep_forward(x, t, z, packed, roll_sign))

    assert out.shape == (B, OUT_CH, H // 2, W // 2), out.shape
    assert bool(jnp.all(jnp.isfinite(out)))

    # Numerical check against the pure-JAX reference of the original module
    # (pins the roll direction, im2col layout, parameter packing and GN folding).
    ref = jax.block_until_ready(downstep_reference(x, t, z, raw))
    err = float(jnp.max(jnp.abs(out - ref)))
    assert err < 5e-2, f"kernel vs reference max abs error {err}"
    print("KERNEL_OK")
</pallas_src>

<mosaic_0001>
module attributes {stable_mosaic.version = 11 : i64} {
  func.func @probe(%arg0: memref<8x128xf32, #tpu.memory_space<vmem>>, %arg1: memref<8x128xf32, #tpu.memory_space<vmem>>) attributes {dimension_semantics = [], scalar_prefetch = 0 : i64, scratch_operands = 0 : i64, tpu.core_type = #tpu.core_type<tc>} {
    %c0 = arith.constant 0 : index
    %c0_0 = arith.constant 0 : index
    %0 = vector.load %arg0[%c0, %c0_0] : memref<8x128xf32, #tpu.memory_space<vmem>>, vector<8x128xf32>
    %c1_i32 = arith.constant 1 : i32
    %1 = tpu.dynamic_rotate %0 by %c1_i32 dim 1 : vector<8x128xf32>, i32 -> vector<8x128xf32>
    %c0_1 = arith.constant 0 : index
    %c0_2 = arith.constant 0 : index
    %2 = vector.load %arg1[%c0_1, %c0_2] : memref<8x128xf32, #tpu.memory_space<vmem>>, vector<8x128xf32>
    tpu.vector_store %arg1[%c0_1, %c0_2], %1 {strides = array<i32>} : memref<8x128xf32, #tpu.memory_space<vmem>>, vector<8x128xf32>,
    return
  }
}

</mosaic_0001>

<llo_original>
// kernel: tpu_custom_call.1
$region0: #{tpu_custom_call.1}
  #allocation0 [shape = 'u32[]', space=smem, size = 0x4, offset = 0x4, fixed_abs, tag = 'smem constant byte address 0x4 - core index']
  #allocation1 [shape = 'u32[144,128]{1,0:T(1,128)}', space=vmem, size = 0x12000, scoped, tag = 'internal scratch']
  %s0 = inlined_call_operand.hbm [shape: f32[8,128], index: 0, kind: input, shape index: {}]
  %s1 = inlined_call_operand.hbm [shape: f32[8,128], index: 1, kind: output, shape index: {}]
  %s2 = sld [smem:[#allocation0]]
  $region18: #{tpu_custom_call.1} parent=0
    _
  %s4 = ssub.s32 1, %s2
  %s5 = scalar_select 0, %s4, %s2
  $region1: #{tpu_custom_call.1} parent=0
    #allocation2 [shape = 'u8[4096]{0}', space=vmem, size = 0x1000, scoped, tag = 'input window, operand 0, single buffered']
    #allocation3 [shape = 's32[1]{0}', space=sflag, size = 0x4, scoped, tag = 'scoped memory for tpu_custom_call.1']
    #allocation4 [shape = 's32[1]{0}', space=sflag, size = 0x4, scoped, tag = 'scoped memory for tpu_custom_call.1']
    #allocation5 [shape = 'u8[4096]{0}', space=vmem, size = 0x1000, scoped, tag = 'output window, operand 0, single buffered']
    %6 = vsyncpa [#allocation3], 0
    %7 = vsyncpa [#allocation4], 0
    // Predicated region
    $region2: #{tpu_custom_call.1} parent=1 // pred_check
      _
    $region3: #{tpu_custom_call.1} parent=1 // pred_check_branch
      %9 = sbr.rel (0) target = $region5
    $region4: #{tpu_custom_call.1} parent=1 // pred_region
      %s11 = ssub.s32 128, 128
      %12 = vsyncadd [#allocation3], %s11
      %s14 = sshll.u32 [#allocation2], 4
      %s15 = int_to_ptr.vmem [resolvable:$true] %s14
      %17 = dma.hbm_to_vmem [thread:$0]  %s0, 128, %s15, [#allocation3]
    $region5: #{tpu_custom_call.1} parent=1 // pred_fallthru
      _
    // Predicated region
    $region6: #{tpu_custom_call.1} parent=1 // pred_check
      _
    $region7: #{tpu_custom_call.1} parent=1 // pred_check_branch
      %19 = sbr.rel (0) target = $region9
    $region8: #{tpu_custom_call.1} parent=1 // pred_region
      %20 = dma.done [#allocation3], 128
    $region9: #{tpu_custom_call.1} parent=1 // pred_fallthru
      _
    %v21 = vld [vmem:[#allocation2] sm:$0xff]
    %22 = vrot.lane.b32.xlu0 %v21, 1
    %v23 = vpop.permute.xlu0 %22
    %24 = vst [vmem:[#allocation5] sm:$0xff] %v23
    // Predicated region
    $region10: #{tpu_custom_call.1} parent=1 // pred_check
      _
    $region11: #{tpu_custom_call.1} parent=1 // pred_check_branch
      %26 = sbr.rel (0) target = $region13
    $region12: #{tpu_custom_call.1} parent=1 // pred_region
      %s28 = ssub.s32 128, 128
      %29 = vsyncadd [#allocation4], %s28
      %s31 = sshll.u32 [#allocation5], 4
      %s32 = int_to_ptr.vmem [resolvable:$true] %s31
      %34 = dma.vmem_to_hbm [thread:$0]  %s32, 128, %s1, [#allocation4]
    $region13: #{tpu_custom_call.1} parent=1 // pred_fallthru
      _
    // Predicated region
    $region14: #{tpu_custom_call.1} parent=1 // pred_check
      _
    $region15: #{tpu_custom_call.1} parent=1 // pred_check_branch
      %36 = sbr.rel (0) target = $region17
    $region16: #{tpu_custom_call.1} parent=1 // pred_region
      %37 = dma.done [#allocation4], 128
    $region17: #{tpu_custom_call.1} parent=1 // pred_fallthru
      _
    %38 = vsyncpa [#allocation3], 1
    %39 = vsyncpa [#allocation4], 1

</llo_original>
